<compile_context>
chip_gen: v6e
topology: v6e:2x2x1
jax: 0.10.0
libtpu: 0.0.40
codegen_flags: <defaults>
</compile_context>

<pallas_src>
import math

import jax
import jax.numpy as jnp
from jax.experimental import pallas as pl
from jax.experimental.pallas import tpu as pltpu


# -----------------------------------------------------------------------------
# Pallas kernel: fused attention + gated projection + tag projection
# -----------------------------------------------------------------------------
def _da_bert_pair_kernel(domq_ref, embq_ref, emb_ref, w_ref, wlin_ref, blin_ref,
                         out_ref):
    # domq_ref : (bb, Sq, D)  domain_embeds query tile   (compute dtype, e.g. bf16)
    # embq_ref : (bb, Sq, D)  embeds at the same query rows (residual / @W path)
    # emb_ref  : (bb, S,  D)  full embeds (keys/values); revisited across q tiles
    # w_ref    : (D, D)       self.W.weight, used as x @ W (no transpose)
    # wlin_ref : (D, Tp)      liner.weight^T, lane-padded to Tp
    # blin_ref : (1, Tp)      liner.bias, lane-padded (f32)
    # out_ref  : (bb, Sq, Tp) float32
    kv = emb_ref[...]                                   # (bb, S, D) compute dtype
    d_model = kv.shape[-1]

    # Fold the 1/sqrt(d_model) "temper" into q (Sq*D multiplies instead of Sq*S).
    scale = jnp.asarray(1.0 / math.sqrt(float(d_model)), domq_ref.dtype)
    q = domq_ref[...] * scale                           # (bb, Sq, D)

    # scores = q @ kv^T as a contraction (no explicit XLU transpose), bf16
    # operands on the MXU, accumulated in f32.
    scores = jnp.einsum('bqd,bkd->bqk', q, kv,
                        preferred_element_type=jnp.float32)       # (bb, Sq, S) f32

    # Softmax over keys: max-subtracted, reciprocal-multiply (EUP slot) instead
    # of an Sq*S divide.  attn_dropout is identity in eval mode.  Cast the
    # probabilities straight back to the compute dtype so only one (bb,Sq,S)
    # f32 temp is live.
    m = jnp.max(scores, axis=-1, keepdims=True)
    p = jnp.exp(scores - m)
    inv = pl.reciprocal(jnp.sum(p, axis=-1, keepdims=True), approx=True)
    attn = (p * inv).astype(kv.dtype)                             # (bb, Sq, S)

    attn_out = jnp.einsum('bqk,bkd->bqd', attn, kv,
                          preferred_element_type=jnp.float32)     # (bb, Sq, D) f32

    emb_q = embq_ref[...]                                         # (bb, Sq, D)
    bb, sq, _ = emb_q.shape

    # relu(attn_out @ W + embeds @ W) == relu((attn_out + embeds) @ W):
    # distributivity over the shared W halves the largest matmul.  Flatten the
    # leading dims so the MXU runs one (bb*Sq, D) @ (D, D) matmul with bf16
    # operands / f32 accumulation instead of bb batched matmuls.
    x = (attn_out + emb_q.astype(jnp.float32)).astype(w_ref.dtype)
    x2 = x.reshape(bb * sq, d_model)
    proj = jnp.dot(x2, w_ref[...], preferred_element_type=jnp.float32)

    hidden = emb_q.astype(jnp.float32).reshape(bb * sq, d_model) \
        + jnp.maximum(proj, 0.0)                                  # (bb*Sq, D) f32

    # dropout1 is identity in eval mode; final (lane-padded) tag projection,
    # again a single flattened bf16 matmul with f32 accumulation.
    feats = jnp.dot(hidden.astype(wlin_ref.dtype), wlin_ref[...],
                    preferred_element_type=jnp.float32) \
        + blin_ref[...].astype(jnp.float32)                       # (bb*Sq, Tp)

    out_ref[...] = feats.reshape(bb, sq, -1).astype(out_ref.dtype)


# -----------------------------------------------------------------------------
# VMEM-aware block sizing (per TPU generation)
# -----------------------------------------------------------------------------
def _largest_divisor_leq(n, cap):
    for d in range(min(n, cap), 0, -1):
        if n % d == 0:
            return d
    return 1


def _vmem_limit_bytes():
    """~85% of physical VMEM (64 MiB v7x per core, 128 MiB v5e/v6e)."""
    cap = 64 << 20                      # conservative fallback (v7x per-core)
    try:
        if hasattr(pltpu, "get_tpu_info"):
            info = pltpu.get_tpu_info()
            cap = int(getattr(info, "vmem_capacity_bytes", cap)) or cap
    except Exception:
        pass
    return int(cap * 0.85)


def _step_vmem_bytes(bb, sq, S, D, Tp, act_bytes, w_bytes):
    """Rough per-grid-step VMEM footprint: pipeline buffers + temps + weights."""
    dbl = 2                                           # double-buffered blocks
    dma = dbl * bb * sq * D * act_bytes               # domain query tile
    dma += dbl * bb * sq * D * act_bytes              # embeds query tile (residual)
    dma += dbl * bb * S * D * act_bytes               # embeds key/value tile
    dma += dbl * bb * sq * Tp * 4                     # f32 output tile
    weights = (D * D + D * Tp) * w_bytes + Tp * 4     # whole-array resident
    temps = bb * sq * S * (4 + act_bytes)             # f32 scores + bf16 attn
    temps += 3 * bb * sq * D * 4                      # attn_out / x / hidden (f32)
    temps += bb * sq * Tp * 4                         # feats before store
    return dma + weights + temps


def _pick_blocks(B, S, D, Tp, act_bytes, w_bytes, budget):
    """VMEM-aware (batch_block, query_block) choice."""
    # Query tile: multiple of 128 when possible (clean MXU M tiles), <= 256,
    # and a divisor of S so there are no ragged tiles.
    sq = None
    for cand in (256, 128):
        if S % cand == 0:
            sq = cand
            break
    if sq is None:
        sq = _largest_divisor_leq(S, min(S, 256))

    def fits(bb_, sq_):
        return _step_vmem_bytes(bb_, sq_, S, D, Tp, act_bytes, w_bytes) <= budget

    bb = 1
    for cand in range(min(B, 8), 0, -1):
        if B % cand == 0 and fits(cand, sq):
            bb = cand
            break
    # If even bb=1 overflows, shrink the query tile (halving a divisor of S
    # keeps it a divisor of S).
    while not fits(1, sq) and sq % 2 == 0 and sq > 8:
        sq //= 2
    if not fits(bb, sq):
        bb = 1
    # Give megacore (v7x has 2 TensorCores) at least 2 parallel grid steps.
    while (B // bb) * (S // sq) < 2 and bb > 1:
        bb = _largest_divisor_leq(B, bb - 1)
    return bb, sq


# -----------------------------------------------------------------------------
# Wrapper
# -----------------------------------------------------------------------------
def da_bert_pair_edr_crf_forward(domain_embeds, embeds, w_weight, liner_weight,
                                 liner_bias, *, compute_dtype=jnp.bfloat16,
                                 batch_block=None, query_block=None):
    """Fused forward (post-BERT) via a single pallas_call.

    domain_embeds, embeds : (B, S, D)
    w_weight              : (D, D)  -- nn.Linear(d,d,bias=False).weight (used untransposed)
    liner_weight          : (T, D)  -- nn.Linear(d, tagset).weight
    liner_bias            : (T,)
    returns feats_out     : (B, S, T) float32
    """
    B, S, D = embeds.shape
    T = liner_weight.shape[0]

    # Lane-dense tag dimension: pad T up to a multiple of 128 so output stores
    # are unmasked full-lane vst; slice back after the kernel.
    Tp = ((T + 127) // 128) * 128

    # MXU-friendly operands: bf16 activations/weights, f32 accumulation in-kernel.
    dom_c = domain_embeds.astype(compute_dtype)
    emb_c = embeds.astype(compute_dtype)
    w_c = w_weight.astype(compute_dtype)
    wlin = jnp.zeros((D, Tp), compute_dtype).at[:, :T].set(
        liner_weight.T.astype(compute_dtype))
    blin = jnp.zeros((1, Tp), jnp.float32).at[0, :T].set(
        liner_bias.astype(jnp.float32))

    vmem_limit = _vmem_limit_bytes()
    act_bytes = jnp.dtype(compute_dtype).itemsize
    bb, sq = _pick_blocks(B, S, D, Tp, act_bytes, act_bytes,
                          budget=int(vmem_limit * 0.9))
    if batch_block is not None:
        bb = batch_block
    if query_block is not None:
        sq = query_block
    grid = (B // bb, S // sq)

    # Advisory cost estimate so XLA schedules surrounding ops sensibly.
    flops = 2 * B * S * (2 * S * D + D * D + D * Tp)
    bytes_accessed = (3 * B * S * D * act_bytes
                      + (D * D + D * Tp) * act_bytes + Tp * 4
                      + B * S * Tp * 4)

    # TODO(synk): for very long sequences (S >~ 2k) the (bb, S, D) key/value
    #             block and (bb, Sq, S) score tile should move to flash-style
    #             online-softmax KV tiling; not needed at BERT-scale S.
    out = pl.pallas_call(
        _da_bert_pair_kernel,
        out_shape=jax.ShapeDtypeStruct((B, S, Tp), jnp.float32),
        grid_spec=pltpu.PrefetchScalarGridSpec(
            num_scalar_prefetch=0,
            grid=grid,
            in_specs=[
                # domain_embeds query tile.
                pl.BlockSpec((bb, sq, D), lambda i, q: (i, q, 0)),
                # embeds at the same query rows (residual / @W path).
                pl.BlockSpec((bb, sq, D), lambda i, q: (i, q, 0)),
                # full embeds (keys/values): index ignores q; with grid ordered
                # (batch, q) the block is revisited consecutively, not re-DMAed.
                pl.BlockSpec((bb, S, D), lambda i, q: (i, 0, 0)),
                # Whole-array VMEM residency for constant weights.
                pl.BlockSpec(memory_space=pltpu.MemorySpace.VMEM),  # W.weight
                pl.BlockSpec(memory_space=pltpu.MemorySpace.VMEM),  # liner.weight^T
                pl.BlockSpec(memory_space=pltpu.MemorySpace.VMEM),  # liner.bias
            ],
            out_specs=pl.BlockSpec((bb, sq, Tp), lambda i, q: (i, q, 0)),
        ),
        compiler_params=pltpu.CompilerParams(
            dimension_semantics=("parallel", "parallel"),
            vmem_limit_bytes=vmem_limit),
        cost_estimate=pl.CostEstimate(
            flops=flops, transcendentals=B * S * S,
            bytes_accessed=bytes_accessed),
    )(dom_c, emb_c, emb_c, w_c, wlin, blin)

    return out[..., :T]


# -----------------------------------------------------------------------------
# Deterministic "BERT" stub (plain-JAX glue): embedding + position + layernorm
# -----------------------------------------------------------------------------
def bert_stub(token_ids, word_emb, pos_emb, ln_gamma, ln_beta, attention_mask=None):
    # TODO(synk): attention_mask only affects the (un-implemented) BERT encoder.
    del attention_mask
    S = token_ids.shape[1]
    x = word_emb[token_ids] + pos_emb[:S][None, :, :]
    mu = jnp.mean(x, axis=-1, keepdims=True)
    var = jnp.mean((x - mu) ** 2, axis=-1, keepdims=True)
    return (x - mu) / jnp.sqrt(var + 1e-12) * ln_gamma + ln_beta


# -----------------------------------------------------------------------------
# Pure-JAX reference of the post-BERT math (for a correctness check)
# -----------------------------------------------------------------------------
def reference_forward(domain_embeds, embeds, w_weight, liner_weight, liner_bias):
    d = embeds.shape[-1]
    scores = jnp.einsum('bqd,bkd->bqk', domain_embeds, embeds) / jnp.sqrt(float(d))
    attn = jax.nn.softmax(scores, axis=-1)
    attn_out = jnp.einsum('bqk,bkd->bqd', attn, embeds)
    proj = jnp.einsum('bsd,de->bse', attn_out, w_weight) + \
           jnp.einsum('bsd,de->bse', embeds, w_weight)
    hidden = embeds + jax.nn.relu(proj)
    feats = jnp.einsum('bsd,td->bst', hidden, liner_weight) + liner_bias
    return feats


if __name__ == "__main__":
    # Small, module-consistent shapes
    B, S, D, T = 2, 8, 32, 8          # batch, seq_len, d_model, tagset_size
    VOCAB = 50

    key = jax.random.PRNGKey(0)
    keys = jax.random.split(key, 8)

    # Deterministic "BERT" parameters (stub)
    word_emb = jax.random.normal(keys[0], (VOCAB, D), jnp.float32) * 0.1
    pos_emb = jax.random.normal(keys[1], (S, D), jnp.float32) * 0.1
    ln_gamma = jnp.ones((D,), jnp.float32)
    ln_beta = jnp.zeros((D,), jnp.float32)

    # Module parameters
    w_weight = jax.random.normal(keys[2], (D, D), jnp.float32) * 0.1   # self.W.weight
    liner_weight = jax.random.normal(keys[3], (T, D), jnp.float32) * 0.1
    liner_bias = jax.random.normal(keys[4], (T,), jnp.float32) * 0.1

    # Inputs
    input_ids = jax.random.randint(keys[5], (B, S), 0, VOCAB)
    domain_id = jax.random.randint(keys[6], (B, S), 0, VOCAB)
    attention_mask = jnp.ones((B, S), jnp.int32)

    # "BERT" encodings (glue)
    domain_embeds = bert_stub(domain_id, word_emb, pos_emb, ln_gamma, ln_beta)
    embeds = bert_stub(input_ids, word_emb, pos_emb, ln_gamma, ln_beta,
                       attention_mask=attention_mask)

    # Fused Pallas forward (bf16 MXU operands, f32 accumulation)
    feats_out = da_bert_pair_edr_crf_forward(
        domain_embeds, embeds, w_weight, liner_weight, liner_bias)
    feats_out = jax.block_until_ready(feats_out)

    # Correctness check against the plain-f32 JAX reference.  Tolerance covers
    # the bf16 matmul operands and the EUP approximate-reciprocal softmax.
    ref = reference_forward(domain_embeds, embeds, w_weight, liner_weight, liner_bias)
    assert feats_out.shape == (B, S, T)
    assert jnp.allclose(feats_out, ref, atol=5e-2, rtol=5e-2), "mismatch vs reference"

    print("KERNEL_OK")
</pallas_src>

<mosaic_0001>
module attributes {stable_mosaic.version = 11 : i64} {
  func.func @_da_bert_pair_kernel(%arg0: i32, %arg1: i32, %arg2: memref<1x8x32xbf16, #tpu.memory_space<vmem>>, %arg3: memref<1x8x32xbf16, #tpu.memory_space<vmem>>, %arg4: memref<1x8x32xbf16, #tpu.memory_space<vmem>>, %arg5: memref<32x32xbf16, #tpu.memory_space<vmem>>, %arg6: memref<32x128xbf16, #tpu.memory_space<vmem>>, %arg7: memref<1x128xf32, #tpu.memory_space<vmem>>, %arg8: memref<1x8x128xf32, #tpu.memory_space<vmem>>) attributes {dimension_semantics = [#tpu.dimension_semantics<parallel>, #tpu.dimension_semantics<parallel>], iteration_bounds = array<i64: 2, 1>, scalar_prefetch = 0 : i64, scratch_operands = 0 : i64, tpu.core_type = #tpu.core_type<tc>, window_params = [{transform_indices = @transform_0, window_bounds = array<i64: 1, 8, 32>}, {transform_indices = @transform_1, window_bounds = array<i64: 1, 8, 32>}, {transform_indices = @transform_2, window_bounds = array<i64: 1, 8, 32>}, {pipeline_mode = #tpu.pipeline_mode<synchronous>, transform_indices = @transform_3, window_bounds = array<i64: 32, 32>}, {pipeline_mode = #tpu.pipeline_mode<synchronous>, transform_indices = @transform_4, window_bounds = array<i64: 32, 128>}, {pipeline_mode = #tpu.pipeline_mode<synchronous>, transform_indices = @transform_5, window_bounds = array<i64: 1, 128>}, {transform_indices = @transform_6, window_bounds = array<i64: 1, 8, 128>}]} {
    %c0 = arith.constant 0 : index
    %c0_0 = arith.constant 0 : index
    %c0_1 = arith.constant 0 : index
    %0 = vector.load %arg4[%c0, %c0_0, %c0_1] : memref<1x8x32xbf16, #tpu.memory_space<vmem>>, vector<1x8x32xbf16>
    %c0_2 = arith.constant 0 : index
    %c0_3 = arith.constant 0 : index
    %c0_4 = arith.constant 0 : index
    %1 = vector.load %arg2[%c0_2, %c0_3, %c0_4] : memref<1x8x32xbf16, #tpu.memory_space<vmem>>, vector<1x8x32xbf16>
    %cst = arith.constant 1.767580e-01 : bf16
    %2 = vector.broadcast %cst : bf16 to vector<1x8x32xbf16>
    %3 = arith.mulf %1, %2 : vector<1x8x32xbf16>
    "tpu.trace_start"() <{level = 10 : i32, message = "bqd,bkd->bqk"}> : () -> ()
    %cst_5 = arith.constant dense<0.000000e+00> : vector<1x8x8xf32>
    %4 = tpu.matmul %3, %0, %cst_5 {dimension_numbers = #tpu.dot_dimension_numbers<[2], [2], [1], [1], [0, 0, 0, 1, 1, 1], [0], [0]>} : vector<1x8x32xbf16>, vector<1x8x32xbf16>, vector<1x8x8xf32> -> vector<1x8x8xf32>
    "tpu.trace_stop"() : () -> ()
    %cst_6 = arith.constant dense<0xFF800000> : vector<1x8xf32>
    %5 = vector.multi_reduction <maximumf>, %4, %cst_6 [2] : vector<1x8x8xf32> to vector<1x8xf32>
    %6 = vector.shape_cast %5 : vector<1x8xf32> to vector<1x8x1xf32>
    %7 = vector.broadcast %6 : vector<1x8x1xf32> to vector<1x8x8xf32>
    %8 = arith.subf %4, %7 : vector<1x8x8xf32>
    %9 = math.exp %8 : vector<1x8x8xf32>
    %cst_7 = arith.constant dense<0.000000e+00> : vector<1x8xf32>
    %10 = vector.multi_reduction <add>, %9, %cst_7 [2] : vector<1x8x8xf32> to vector<1x8xf32>
    %11 = vector.shape_cast %10 : vector<1x8xf32> to vector<1x8x1xf32>
    %12 = tpu.reciprocal %11 {approx = true} : vector<1x8x1xf32> -> vector<1x8x1xf32>
    %13 = vector.broadcast %12 : vector<1x8x1xf32> to vector<1x8x8xf32>
    %14 = arith.mulf %9, %13 : vector<1x8x8xf32>
    %15 = arith.truncf %14 : vector<1x8x8xf32> to vector<1x8x8xbf16>
    "tpu.trace_start"() <{level = 10 : i32, message = "bqk,bkd->bqd"}> : () -> ()
    %cst_8 = arith.constant dense<0.000000e+00> : vector<1x8x32xf32>
    %16 = tpu.matmul %15, %0, %cst_8 {dimension_numbers = #tpu.dot_dimension_numbers<[2], [1], [1], [2], [0, 0, 0, 1, 1, 2], [0], [0]>} : vector<1x8x8xbf16>, vector<1x8x32xbf16>, vector<1x8x32xf32> -> vector<1x8x32xf32>
    "tpu.trace_stop"() : () -> ()
    %c0_9 = arith.constant 0 : index
    %c0_10 = arith.constant 0 : index
    %c0_11 = arith.constant 0 : index
    %17 = vector.load %arg3[%c0_9, %c0_10, %c0_11] : memref<1x8x32xbf16, #tpu.memory_space<vmem>>, vector<1x8x32xbf16>
    %18 = arith.extf %17 : vector<1x8x32xbf16> to vector<1x8x32xf32>
    %19 = arith.addf %16, %18 : vector<1x8x32xf32>
    %20 = arith.truncf %19 : vector<1x8x32xf32> to vector<1x8x32xbf16>
    %21 = vector.shape_cast %20 : vector<1x8x32xbf16> to vector<8x32xbf16>
    %c0_12 = arith.constant 0 : index
    %c0_13 = arith.constant 0 : index
    %22 = vector.load %arg5[%c0_12, %c0_13] : memref<32x32xbf16, #tpu.memory_space<vmem>>, vector<32x32xbf16>
    %cst_14 = arith.constant dense<0.000000e+00> : vector<8x32xf32>
    %23 = tpu.matmul %21, %22, %cst_14 {dimension_numbers = #tpu.dot_dimension_numbers<[1], [0], [0], [1], [0, 0, 1, 1], [], []>} : vector<8x32xbf16>, vector<32x32xbf16>, vector<8x32xf32> -> vector<8x32xf32>
    %24 = arith.extf %17 : vector<1x8x32xbf16> to vector<1x8x32xf32>
    %25 = vector.shape_cast %24 : vector<1x8x32xf32> to vector<8x32xf32>
    %cst_15 = arith.constant 0.000000e+00 : f32
    %26 = vector.broadcast %cst_15 : f32 to vector<8x32xf32>
    %27 = arith.maximumf %23, %26 : vector<8x32xf32>
    %28 = arith.addf %25, %27 : vector<8x32xf32>
    %29 = arith.truncf %28 : vector<8x32xf32> to vector<8x32xbf16>
    %c0_16 = arith.constant 0 : index
    %c0_17 = arith.constant 0 : index
    %30 = vector.load %arg6[%c0_16, %c0_17] : memref<32x128xbf16, #tpu.memory_space<vmem>>, vector<32x128xbf16>
    %cst_18 = arith.constant dense<0.000000e+00> : vector<8x128xf32>
    %31 = tpu.matmul %29, %30, %cst_18 {dimension_numbers = #tpu.dot_dimension_numbers<[1], [0], [0], [1], [0, 0, 1, 1], [], []>} : vector<8x32xbf16>, vector<32x128xbf16>, vector<8x128xf32> -> vector<8x128xf32>
    %c0_19 = arith.constant 0 : index
    %c0_20 = arith.constant 0 : index
    %32 = vector.load %arg7[%c0_19, %c0_20] : memref<1x128xf32, #tpu.memory_space<vmem>>, vector<1x128xf32>
    %33 = vector.broadcast %32 : vector<1x128xf32> to vector<8x128xf32>
    %34 = arith.addf %31, %33 : vector<8x128xf32>
    %35 = vector.shape_cast %34 : vector<8x128xf32> to vector<1x8x128xf32>
    %c0_21 = arith.constant 0 : index
    %c0_22 = arith.constant 0 : index
    %c0_23 = arith.constant 0 : index
    %36 = vector.load %arg8[%c0_21, %c0_22, %c0_23] : memref<1x8x128xf32, #tpu.memory_space<vmem>>, vector<1x8x128xf32>
    tpu.vector_store %arg8[%c0_21, %c0_22, %c0_23], %35 {strides = array<i32>} : memref<1x8x128xf32, #tpu.memory_space<vmem>>, vector<1x8x128xf32>,
    return
  }
  func.func @transform_0(%arg0: i32, %arg1: i32) -> (i32, i32, i32) {
    %c0_i32 = arith.constant 0 : i32
    %c0_i32_0 = arith.constant 0 : i32
    return %arg0, %arg1, %c0_i32 : i32, i32, i32
  }
  func.func @transform_1(%arg0: i32, %arg1: i32) -> (i32, i32, i32) {
    %c0_i32 = arith.constant 0 : i32
    %c0_i32_0 = arith.constant 0 : i32
    return %arg0, %arg1, %c0_i32 : i32, i32, i32
  }
  func.func @transform_2(%arg0: i32, %arg1: i32) -> (i32, i32, i32) {
    %c0_i32 = arith.constant 0 : i32
    %c0_i32_0 = arith.constant 0 : i32
    %c0_i32_1 = arith.constant 0 : i32
    return %arg0, %c0_i32, %c0_i32_0 : i32, i32, i32
  }
  func.func @transform_3(%arg0: i32, %arg1: i32) -> (i32, i32) {
    %c0_i32 = arith.constant 0 : i32
    %c0_i32_0 = arith.constant 0 : i32
    %c0_i32_1 = arith.constant 0 : i32
    return %c0_i32, %c0_i32_0 : i32, i32
  }
  func.func @transform_4(%arg0: i32, %arg1: i32) -> (i32, i32) {
    %c0_i32 = arith.constant 0 : i32
    %c0_i32_0 = arith.constant 0 : i32
    %c0_i32_1 = arith.constant 0 : i32
    return %c0_i32, %c0_i32_0 : i32, i32
  }
  func.func @transform_5(%arg0: i32, %arg1: i32) -> (i32, i32) {
    %c0_i32 = arith.constant 0 : i32
    %c0_i32_0 = arith.constant 0 : i32
    %c0_i32_1 = arith.constant 0 : i32
    return %c0_i32, %c0_i32_0 : i32, i32
  }
  func.func @transform_6(%arg0: i32, %arg1: i32) -> (i32, i32, i32) {
    %c0_i32 = arith.constant 0 : i32
    %c0_i32_0 = arith.constant 0 : i32
    return %arg0, %arg1, %c0_i32 : i32, i32, i32
  }
}

</mosaic_0001>

<llo_original>
// kernel: tpu_custom_call.1
$region0: #{tpu_custom_call.1}
  #allocation0 [shape = 'u32[]', space=smem, size = 0x4, offset = 0x4, fixed_abs, tag = 'smem constant byte address 0x4 - core index']
  #allocation1 [shape = 'u32[144,128]{1,0:T(1,128)}', space=vmem, size = 0x12000, scoped, tag = 'internal scratch']
  %s0 = inlined_call_operand.hbm [shape: bf16[2,8,32], index: 0, kind: input, shape index: {}]
  %s1 = inlined_call_operand.hbm [shape: bf16[2,8,32], index: 1, kind: input, shape index: {}]
  %s2 = inlined_call_operand.hbm [shape: bf16[2,8,32], index: 2, kind: input, shape index: {}]
  %s3 = inlined_call_operand.hbm [shape: bf16[32,32], index: 3, kind: input, shape index: {}]
  %s4 = inlined_call_operand.hbm [shape: bf16[32,128], index: 4, kind: input, shape index: {}]
  %s5 = inlined_call_operand.vmem [shape: f32[1,128], index: 5, kind: input, shape index: {}]
  %s6 = inlined_call_operand.hbm [shape: f32[2,8,128], index: 6, kind: output, shape index: {}]
  %s7 = sld [smem:[#allocation0]]
  $region77: #{tpu_custom_call.1} parent=0
    _
  %s9 = ssub.s32 1, %s7
  %s10 = scalar_select 0, %s9, %s7
  $region1: #{tpu_custom_call.1} parent=0
    #allocation2 [shape = 'u8[4096]{0}', space=vmem, size = 0x1000, scoped, tag = 'input window, operand 0']
    #allocation3 [shape = 's32[2]{0}', space=sflag, size = 0x8, scoped, tag = 'scoped memory for tpu_custom_call.1']
    #allocation4 [shape = 's32[2]{0}', space=sflag, size = 0x8, scoped, tag = 'scoped memory for tpu_custom_call.1']
    #allocation5 [shape = 'u8[4096]{0}', space=vmem, size = 0x1000, scoped, tag = 'input window, operand 1']
    #allocation6 [shape = 's32[2]{0}', space=sflag, size = 0x8, scoped, tag = 'scoped memory for tpu_custom_call.1']
    #allocation7 [shape = 'u8[4096]{0}', space=vmem, size = 0x1000, scoped, tag = 'input window, operand 2']
    #allocation8 [shape = 'u8[8192]{0}', space=vmem, size = 0x2000, scoped, tag = 'input window, operand 3, single buffered']
    #allocation9 [shape = 's32[1]{0}', space=sflag, size = 0x4, scoped, tag = 'scoped memory for tpu_custom_call.1']
    #allocation10 [shape = 'u8[8192]{0}', space=vmem, size = 0x2000, scoped, tag = 'input window, operand 4, single buffered']
    #allocation11 [shape = 'u8[8192]{0}', space=vmem, size = 0x2000, scoped, tag = 'output window, operand 0']
    %11 = vsyncpa [#allocation3], 0
    %s12 = scalar_lea.sflag [#allocation3], 1
    %13 = vsyncpa %s12, 0
    %14 = vsyncpa [#allocation6], 0
    %s15 = scalar_lea.sflag [#allocation6], 1
    %16 = vsyncpa %s15, 0
    %17 = vsyncpa [#allocation9], 0
    %18 = vsyncpa [#allocation4], 0
    %s19 = scalar_lea.sflag [#allocation4], 1
    %20 = vsyncpa %s19, 0
    loop: start=0, step=1, limit=4
    $region2: #{tpu_custom_call.1} parent=1 // loop_pre_header
      _
    $region3: #{tpu_custom_call.1} parent=1 // loop_header
      %s22 = sphi 0, %s26
      %p23 = scmp.ge.s32.totalorder %s22, 4
      %s29 = sphi 0, %s41
      %s30 = sphi 0, %s37
      %s31 = sphi 0, %s29
      %s32 = sphi 0, %s30
      %s33 = sphi 0, %s31
      %s34 = sphi 0, %s32
      %s46 = sphi 0, %s48
      %s49 = sphi 0, %s46
      %s50 = sphi 0, %s49
      %s66 = sphi 0, %s50
      %s74 = sphi 0, %s76
      %s77 = sphi 0, %s74
      %s78 = sphi 0, %s77
      %s94 = sphi 0, %s78
      %s100 = sphi 0, %s102
      %s103 = sphi 0, %s100
      %s104 = sphi 0, %s103
      %s120 = sphi 0, %s104
      %s124 = sphi 0, %s124
      %s126 = sphi 0, %s124
      %s127 = sphi 0, %s126
      %s141 = sphi 0, %s127
      %s145 = sphi 0, %s145
      %s147 = sphi 0, %s145
      %s148 = sphi 0, %s147
      %s162 = sphi 0, %s148
      %s166 = sphi 0, %s166
      %s168 = sphi 0, %s166
      %s169 = sphi 0, %s168
      %s183 = sphi 0, %s169
      %s191 = sphi 0, %s193
      %s194 = sphi 0, %s191
      %s195 = sphi 0, %s194
      %s211 = sphi 0, %s195
    $region4: #{tpu_custom_call.1} parent=1 // loop_header_branch
      %25 = sbr.rel (%p23) target = $region8
    $region5: #{tpu_custom_call.1} parent=1 // loop_body
      %s27 = ssub.s32 %s22, 1
      %s28 = ssub.s32 %s22, 2
      %s35 = sadd.s32 1, %s30
      %p36 = scmp.ge.s32.totalorder %s35, 1
      %s37 = scalar_select %p36, 0, %s35
      %s38 = sadd.s32 1, %s29
      %s39 = scalar_select %p36, %s38, %s29
      %p40 = scmp.ge.s32.totalorder %s39, 2
      %s41 = scalar_select %p40, 0, %s39
      %s42 = ssub.s32 %s29, %s41
      %s43 = ssub.s32 %s30, %s37
      %s44 = sor.u32 %s42, %s43
      %p45 = scmp.eq.s32.totalorder %s44, 0
      %s47 = sadd.s32 %s46, 1
      %s48 = scalar_select %p45, %s46, %s47
      %p51 = pneg %p45
      %p52 = scmp.eq.s32.totalorder %s22, 1
      %p53 = por %p51, %p52
      %p54 = scmp.ne.s32.totalorder %s46, %s49
      %p55 = scmp.eq.s32.totalorder %s22, 0
      %p56 = por %p54, %p55
      %p57 = scmp.ne.s32.totalorder %s46, %s49
      %p58 = scmp.eq.s32.totalorder %s27, 1
      %p59 = por %p57, %p58
      %p60 = scmp.ne.s32.totalorder %s49, %s50
      %p61 = scmp.eq.s32.totalorder %s27, 0
      %p62 = por %p60, %p61
      %p63 = scmp.ne.s32.totalorder %s49, %s50
      %p64 = scmp.eq.s32.totalorder %s28, 1
      %p65 = por %p63, %p64
      %p67 = scmp.ne.s32.totalorder %s50, %s66
      %p68 = scmp.eq.s32.totalorder %s28, 0
      %p69 = por %p67, %p68
      %s70 = ssub.s32 %s29, %s41
      %s71 = ssub.s32 %s30, %s37
      %s72 = sor.u32 %s70, %s71
      %p73 = scmp.eq.s32.totalorder %s72, 0
      %s75 = sadd.s32 %s74, 1
      %s76 = scalar_select %p73, %s74, %s75
      %p79 = pneg %p73
      %p80 = scmp.eq.s32.totalorder %s22, 1
      %p81 = por %p79, %p80
      %p82 = scmp.ne.s32.totalorder %s74, %s77
      %p83 = scmp.eq.s32.totalorder %s22, 0
      %p84 = por %p82, %p83
      %p85 = scmp.ne.s32.totalorder %s74, %s77
      %p86 = scmp.eq.s32.totalorder %s27, 1
      %p87 = por %p85, %p86
      %p88 = scmp.ne.s32.totalorder %s77, %s78
      %p89 = scmp.eq.s32.totalorder %s27, 0
      %p90 = por %p88, %p89
      %p91 = scmp.ne.s32.totalorder %s77, %s78
      %p92 = scmp.eq.s32.totalorder %s28, 1
      %p93 = por %p91, %p92
      %p95 = scmp.ne.s32.totalorder %s78, %s94
      %p96 = scmp.eq.s32.totalorder %s28, 0
      %p97 = por %p95, %p96
      %s98 = ssub.s32 %s29, %s41
      %p99 = scmp.eq.s32.totalorder %s98, 0
      %s101 = sadd.s32 %s100, 1
      %s102 = scalar_select %p99, %s100, %s101
      %p105 = pneg %p99
      %p106 = scmp.eq.s32.totalorder %s22, 1
      %p107 = por %p105, %p106
      %p108 = scmp.ne.s32.totalorder %s100, %s103
      %p109 = scmp.eq.s32.totalorder %s22, 0
      %p110 = por %p108, %p109
      %p111 = scmp.ne.s32.totalorder %s100, %s103
      %p112 = scmp.eq.s32.totalorder %s27, 1
      %p113 = por %p111, %p112
      %p114 = scmp.ne.s32.totalorder %s103, %s104
      %p115 = scmp.eq.s32.totalorder %s27, 0
      %p116 = por %p114, %p115
      %p117 = scmp.ne.s32.totalorder %s103, %s104
      %p118 = scmp.eq.s32.totalorder %s28, 1
      %p119 = por %p117, %p118
      %p121 = scmp.ne.s32.totalorder %s104, %s120
      %p122 = scmp.eq.s32.totalorder %s28, 0
      %p123 = por %p121, %p122
      %s125 = sadd.s32 %s124, 1
      %p128 = scmp.eq.s32.totalorder %s22, 1
      %p129 = scmp.ne.s32.totalorder %s124, %s126
      %p130 = scmp.eq.s32.totalorder %s22, 0
      %p131 = por %p129, %p130
      %p132 = scmp.ne.s32.totalorder %s124, %s126
      %p133 = scmp.eq.s32.totalorder %s27, 1
      %p134 = por %p132, %p133
      %p135 = scmp.ne.s32.totalorder %s126, %s127
      %p136 = scmp.eq.s32.totalorder %s27, 0
      %p137 = por %p135, %p136
      %p138 = scmp.ne.s32.totalorder %s126, %s127
      %p139 = scmp.eq.s32.totalorder %s28, 1
      %p140 = por %p138, %p139
      %p142 = scmp.ne.s32.totalorder %s127, %s141
      %p143 = scmp.eq.s32.totalorder %s28, 0
      %p144 = por %p142, %p143
      %s146 = sadd.s32 %s145, 1
      %p149 = scmp.eq.s32.totalorder %s22, 1
      %p150 = scmp.ne.s32.totalorder %s145, %s147
      %p151 = scmp.eq.s32.totalorder %s22, 0
      %p152 = por %p150, %p151
      %p153 = scmp.ne.s32.totalorder %s145, %s147
      %p154 = scmp.eq.s32.totalorder %s27, 1
      %p155 = por %p153, %p154
      %p156 = scmp.ne.s32.totalorder %s147, %s148
      %p157 = scmp.eq.s32.totalorder %s27, 0
      %p158 = por %p156, %p157
      %p159 = scmp.ne.s32.totalorder %s147, %s148
      %p160 = scmp.eq.s32.totalorder %s28, 1
      %p161 = por %p159, %p160
      %p163 = scmp.ne.s32.totalorder %s148, %s162
      %p164 = scmp.eq.s32.totalorder %s28, 0
      %p165 = por %p163, %p164
      %s167 = sadd.s32 %s166, 1
      %p170 = scmp.eq.s32.totalorder %s22, 1
      %p171 = scmp.ne.s32.totalorder %s166, %s168
      %p172 = scmp.eq.s32.totalorder %s22, 0
      %p173 = por %p171, %p172
      %p174 = scmp.ne.s32.totalorder %s166, %s168
      %p175 = scmp.eq.s32.totalorder %s27, 1
      %p176 = por %p174, %p175
      %p177 = scmp.ne.s32.totalorder %s168, %s169
      %p178 = scmp.eq.s32.totalorder %s27, 0
      %p179 = por %p177, %p178
      %p180 = scmp.ne.s32.totalorder %s168, %s169
      %p181 = scmp.eq.s32.totalorder %s28, 1
      %p182 = por %p180, %p181
      %p184 = scmp.ne.s32.totalorder %s169, %s183
      %p185 = scmp.eq.s32.totalorder %s28, 0
      %p186 = por %p184, %p185
      %s187 = ssub.s32 %s29, %s41
      %s188 = ssub.s32 %s30, %s37
      %s189 = sor.u32 %s187, %s188
      %p190 = scmp.eq.s32.totalorder %s189, 0
      %s192 = sadd.s32 %s191, 1
      %s193 = scalar_select %p190, %s191, %s192
      %p196 = pneg %p190
      %p197 = scmp.eq.s32.totalorder %s22, 1
      %p198 = por %p196, %p197
      %p199 = scmp.ne.s32.totalorder %s191, %s194
      %p200 = scmp.eq.s32.totalorder %s22, 0
      %p201 = por %p199, %p200
      %p202 = scmp.ne.s32.totalorder %s191, %s194
      %p203 = scmp.eq.s32.totalorder %s27, 1
      %p204 = por %p202, %p203
      %p205 = scmp.ne.s32.totalorder %s194, %s195
      %p206 = scmp.eq.s32.totalorder %s27, 0
      %p207 = por %p205, %p206
      %p208 = scmp.ne.s32.totalorder %s194, %s195
      %p209 = scmp.eq.s32.totalorder %s28, 1
      %p210 = por %p208, %p209
      %p212 = scmp.ne.s32.totalorder %s195, %s211
      %p213 = scmp.eq.s32.totalorder %s28, 0
      %p214 = por %p212, %p213
      %p215 = scmp.le.s32.totalorder 1, %s22
      %p216 = scmp.lt.s32.totalorder %s22, 3
      %p217 = pnand %p215, %p216
      %p218 = pneg %p217
      // Predicated region
      $region9: #{tpu_custom_call.1} parent=5 // pred_check
        _
      $region10: #{tpu_custom_call.1} parent=5 // pred_check_branch
        %220 = sbr.rel (%p217) target = $region12
      $region11: #{tpu_custom_call.1} parent=5 // pred_region
        %s221 = ssub.s32 %s22, 1
        // Predicated region
        $region13: #{tpu_custom_call.1} parent=11 // pred_check
          %p222 = pneg %p137
        $region14: #{tpu_custom_call.1} parent=11 // pred_check_branch
          %224 = sbr.rel (%p222) target = $region16
        $region15: #{tpu_custom_call.1} parent=11 // pred_region
          %s226 = ssub.s32 256, 256
          %227 = vsyncadd [#allocation9], %s226
          %s228 = sshll.u32 [#allocation8], 4
          %s229 = int_to_ptr.vmem [resolvable:$true] %s228
          %234 = dma.hbm_to_vmem [thread:$0]  %s3, 256, %s229, [#allocation9], 64, 64, 4
        $region16: #{tpu_custom_call.1} parent=11 // pred_fallthru
          _
        // Predicated region
        $region17: #{tpu_custom_call.1} parent=11 // pred_check
          %p235 = pneg %p158
        $region18: #{tpu_custom_call.1} parent=11 // pred_check_branch
          %237 = sbr.rel (%p235) target = $region20
        $region19: #{tpu_custom_call.1} parent=11 // pred_region
          %s239 = ssub.s32 256, 256
          %240 = vsyncadd [#allocation9], %s239
          %s241 = sshll.u32 [#allocation10], 4
          %s242 = int_to_ptr.vmem [resolvable:$true] %s241
          %247 = dma.hbm_to_vmem [thread:$0]  %s4, 256, %s242, [#allocation9], 64, 64, 4
        $region20: #{tpu_custom_call.1} parent=11 // pred_fallthru
          _
        // Predicated region
        $region21: #{tpu_custom_call.1} parent=11 // pred_check
          %p248 = pneg %p179
        $region22: #{tpu_custom_call.1} parent=11 // pred_check_branch
          %250 = sbr.rel (%p248) target = $region24
        $region23: #{tpu_custom_call.1} parent=11 // pred_region
          _
        $region24: #{tpu_custom_call.1} parent=11 // pred_fallthru
          _
      $region12: #{tpu_custom_call.1} parent=5 // pred_fallthru
        _
      %p251 = scmp.lt.s32.totalorder %s22, 2
      // Predicated region
      $region25: #{tpu_custom_call.1} parent=5 // pred_check
        %p252 = pneg %p251
      $region26: #{tpu_custom_call.1} parent=5 // pred_check_branch
        %254 = sbr.rel (%p252) target = $region28
      $region27: #{tpu_custom_call.1} parent=5 // pred_region
        // Predicated region
        $region29: #{tpu_custom_call.1} parent=27 // pred_check
          %p255 = pneg %p56
        $region30: #{tpu_custom_call.1} parent=27 // pred_check_branch
          %257 = sbr.rel (%p255) target = $region32
        $region31: #{tpu_custom_call.1} parent=27 // pred_region
          %s258 = sand.u32 %s46, 1
          %s259 = scalar_lea.sflag [#allocation3], %s258
          %s260 = sand.u32 %s46, 1
          %s261 = smul.addr %s260, 4
          %s262 = scalar_lea.vmem [#allocation2], %s261
          %s264 = ssub.s32 64, 64
          %265 = vsyncadd %s259, %s264
          %s266 = sadd.s32 %s30, %s29
          %s267 = smul.addr %s266, 64
          %s268 = scalar_lea.hbm %s0, %s267
          %s270 = sshll.u32 %s262, 4
          %s271 = int_to_ptr.vmem [resolvable:$true] %s270
          %273 = dma.hbm_to_vmem [thread:$0]  %s268, 64, %s271, %s259
        $region32: #{tpu_custom_call.1} parent=27 // pred_fallthru
          _
        // Predicated region
        $region33: #{tpu_custom_call.1} parent=27 // pred_check
          %p274 = pneg %p84
        $region34: #{tpu_custom_call.1} parent=27 // pred_check_branch
          %276 = sbr.rel (%p274) target = $region36
        $region35: #{tpu_custom_call.1} parent=27 // pred_region
          %s277 = sand.u32 %s22, 1
          %s278 = scalar_lea.sflag [#allocation6], %s277
          %s279 = sand.u32 %s74, 1
          %s280 = smul.addr %s279, 4
          %s281 = scalar_lea.vmem [#allocation5], %s280
          %s283 = ssub.s32 64, 64
          %284 = vsyncadd %s278, %s283
          %s285 = sadd.s32 %s30, %s29
          %s286 = smul.addr %s285, 64
          %s287 = scalar_lea.hbm %s1, %s286
          %s289 = sshll.u32 %s281, 4
          %s290 = int_to_ptr.vmem [resolvable:$true] %s289
          %292 = dma.hbm_to_vmem [thread:$0]  %s287, 64, %s290, %s278
        $region36: #{tpu_custom_call.1} parent=27 // pred_fallthru
          _
        // Predicated region
        $region37: #{tpu_custom_call.1} parent=27 // pred_check
          %p293 = pneg %p110
        $region38: #{tpu_custom_call.1} parent=27 // pred_check_branch
          %295 = sbr.rel (%p293) target = $region40
        $region39: #{tpu_custom_call.1} parent=27 // pred_region
          %s296 = sand.u32 %s22, 1
          %s297 = scalar_lea.sflag [#allocation6], %s296
          %s298 = sand.u32 %s100, 1
          %s299 = smul.addr %s298, 4
          %s300 = scalar_lea.vmem [#allocation7], %s299
          %s302 = ssub.s32 64, 64
          %303 = vsyncadd %s297, %s302
          %s304 = smul.addr %s29, 64
          %s305 = scalar_lea.hbm %s2, %s304
          %s307 = sshll.u32 %s300, 4
          %s308 = int_to_ptr.vmem [resolvable:$true] %s307
          %310 = dma.hbm_to_vmem [thread:$0]  %s305, 64, %s308, %s297
        $region40: #{tpu_custom_call.1} parent=27 // pred_fallthru
          _
      $region28: #{tpu_custom_call.1} parent=5 // pred_fallthru
        _
      %p311 = scmp.le.s32.totalorder 1, %s22
      %p312 = scmp.lt.s32.totalorder %s22, 3
      %p313 = pnand %p311, %p312
      %p314 = pneg %p313
      // Predicated region
      $region41: #{tpu_custom_call.1} parent=5 // pred_check
        _
      $region42: #{tpu_custom_call.1} parent=5 // pred_check_branch
        %316 = sbr.rel (%p313) target = $region44
      $region43: #{tpu_custom_call.1} parent=5 // pred_region
        %s317 = ssub.s32 %s22, 1
        %s318 = sand.u32 %s49, 1
        %s319 = scalar_lea.sflag [#allocation3], %s318
        %s320 = sand.u32 %s49, 1
        %s321 = smul.addr %s320, 4
        %s322 = scalar_lea.vmem [#allocation2], %s321
        // Predicated region
        $region45: #{tpu_custom_call.1} parent=43 // pred_check
          %p323 = pneg %p62
        $region46: #{tpu_custom_call.1} parent=43 // pred_check_branch
          %325 = sbr.rel (%p323) target = $region48
        $region47: #{tpu_custom_call.1} parent=43 // pred_region
          %326 = dma.done %s319, 64
        $region48: #{tpu_custom_call.1} parent=43 // pred_fallthru
          _
        %s327 = sand.u32 %s27, 1
        %s328 = scalar_lea.sflag [#allocation6], %s327
        %s329 = sand.u32 %s77, 1
        %s330 = smul.addr %s329, 4
        %s331 = scalar_lea.vmem [#allocation5], %s330
        // Predicated region
        $region49: #{tpu_custom_call.1} parent=43 // pred_check
          %p332 = pneg %p90
        $region50: #{tpu_custom_call.1} parent=43 // pred_check_branch
          %334 = sbr.rel (%p332) target = $region52
        $region51: #{tpu_custom_call.1} parent=43 // pred_region
          %335 = dma.done %s328, 64
        $region52: #{tpu_custom_call.1} parent=43 // pred_fallthru
          _
        %s336 = sand.u32 %s27, 1
        %s337 = scalar_lea.sflag [#allocation6], %s336
        %s338 = sand.u32 %s103, 1
        %s339 = smul.addr %s338, 4
        %s340 = scalar_lea.vmem [#allocation7], %s339
        // Predicated region
        $region53: #{tpu_custom_call.1} parent=43 // pred_check
          %p341 = pneg %p116
        $region54: #{tpu_custom_call.1} parent=43 // pred_check_branch
          %343 = sbr.rel (%p341) target = $region56
        $region55: #{tpu_custom_call.1} parent=43 // pred_region
          %344 = dma.done %s337, 64
        $region56: #{tpu_custom_call.1} parent=43 // pred_fallthru
          _
        // Predicated region
        $region57: #{tpu_custom_call.1} parent=43 // pred_check
          %p345 = pneg %p137
        $region58: #{tpu_custom_call.1} parent=43 // pred_check_branch
          %347 = sbr.rel (%p345) target = $region60
        $region59: #{tpu_custom_call.1} parent=43 // pred_region
          %348 = dma.done [#allocation9], 256
        $region60: #{tpu_custom_call.1} parent=43 // pred_fallthru
          _
        // Predicated region
        $region61: #{tpu_custom_call.1} parent=43 // pred_check
          %p349 = pneg %p158
        $region62: #{tpu_custom_call.1} parent=43 // pred_check_branch
          %351 = sbr.rel (%p349) target = $region64
        $region63: #{tpu_custom_call.1} parent=43 // pred_region
          %352 = dma.done [#allocation9], 256
        $region64: #{tpu_custom_call.1} parent=43 // pred_fallthru
          _
        %s353 = sand.u32 %s49, 1
        %s354 = scalar_lea.sflag [#allocation3], %s353
        %s355 = sand.u32 %s49, 1
        %s356 = smul.addr %s355, 4
        %s357 = scalar_lea.vmem [#allocation2], %s356
        %p358 = pneg %p62
        %p359 = pneg %p59
        %s360 = sand.u32 %s27, 1
        %s361 = scalar_lea.sflag [#allocation6], %s360
        %s362 = sand.u32 %s77, 1
        %s363 = smul.addr %s362, 4
        %s364 = scalar_lea.vmem [#allocation5], %s363
        %p365 = pneg %p90
        %p366 = pneg %p87
        %s367 = sand.u32 %s27, 1
        %s368 = scalar_lea.sflag [#allocation6], %s367
        %s369 = sand.u32 %s103, 1
        %s370 = smul.addr %s369, 4
        %s371 = scalar_lea.vmem [#allocation7], %s370
        %p372 = pneg %p116
        %p373 = pneg %p113
        %p374 = pneg %p137
        %p375 = pneg %p134
        %p376 = pneg %p158
        %p377 = pneg %p155
        %p378 = pneg %p179
        %p379 = pneg %p176
        %p380 = pneg %p207
        %p381 = pneg %p204
        %s382 = sand.u32 %s194, 1
        %s383 = scalar_lea.sflag [#allocation4], %s382
        %s384 = sand.u32 %s194, 1
        %s385 = smul.addr %s384, 8
        %s386 = scalar_lea.vmem [#allocation11], %s385
        %v389 = vld [vmem:[%s340] sm:$0xf]
        %v390 = vld [vmem:[%s322] sm:$0xf]
        %v391 = vmul.bf16 %v390, 1043676725
        %vm392 = vcmask 261120
        %v394 = vsel %vm392, %v391, 0
        %v397 = vsel %vm392, %v389, 0
        %399 = vmatprep.subr.bf16.mxu0 0
        %400 = vmatpush1.bf16.xpose.msra.mxu0 0
        %401 = vmatprep.subr.bf16.mxu0 0
        %402 = vmatpush1.bf16.xpose.msra.mxu0 0
        %403 = vmatprep.subr.bf16.mxu0 0
        %404 = vmatpush1.bf16.xpose.msra.mxu0 0
        %405 = vmatprep.subr.bf16.mxu0 0
        %406 = vmatpush1.bf16.xpose.msra.mxu0 0
        %407 = vmatprep.subr.bf16.mxu0 0
        %408 = vmatpush1.bf16.xpose.msra.mxu0 0
        %409 = vmatprep.subr.bf16.mxu0 0
        %410 = vmatpush1.bf16.xpose.msra.mxu0 0
        %411 = vmatprep.subr.bf16.mxu0 0
        %412 = vmatpush1.bf16.xpose.msra.mxu0 0
        %413 = vmatprep.subr.bf16.mxu0 0
        %414 = vmatpush1.bf16.xpose.msra.mxu0 %v397
        %415 = vmatprep.subr.bf16.mxu0 0
        %416 = vmatpush2.bf16.xpose.msra.mxu0 0
        %417 = vmatprep.subr.bf16.mxu0 0
        %418 = vmatpush2.bf16.xpose.msra.mxu0 0
        %419 = vmatprep.subr.bf16.mxu0 0
        %420 = vmatpush2.bf16.xpose.msra.mxu0 0
        %421 = vmatprep.subr.bf16.mxu0 0
        %422 = vmatpush2.bf16.xpose.msra.mxu0 0
        %423 = vmatprep.subr.bf16.mxu0 0
        %424 = vmatpush2.bf16.xpose.msra.mxu0 0
        %425 = vmatprep.subr.bf16.mxu0 0
        %426 = vmatpush2.bf16.xpose.msra.mxu0 0
        %427 = vmatprep.subr.bf16.mxu0 0
        %428 = vmatpush2.bf16.xpose.msra.mxu0 0
        %429 = vmatprep.subr.bf16.mxu0 0
        %430 = vmatpush2.bf16.xpose.msra.mxu0 0
        %431 = vmatprep.mubr.bf16.mxu0 0
        %432 = vmatmul.mubr.bf16.gmra.mxu0 %v394
        %v433 = vpop.f32.mrf.mxu0
        %v434 = vadd.f32 0.0, %v433
        %v435 = vpop.f32.mrf.mxu0
        %v436 = vpop.f32.mrf.mxu0
        %v437 = vpop.f32.mrf.mxu0
        %438 = vdwg.mxu0
        %vm439 = vcmask 64512
        %v440 = vsel %vm439, %v434, -inf
        %441 = vmax.xlane.f32.xlu0 %v440
        %v442 = vpop.xlane.xlu0 %441
        %v443 = vsub.f32 %v434, %v442
        %v444 = vmul.f32 %v443, 1.442695
        %v445 = vpow.pop %v444
        %v446 = vsel %vm439, %v445, 0.0
        %447 = vadd.xlane.f32.xlu0 %v446
        %v448 = vpop.xlane.xlu0 %447
        %v449 = vrcp.pop %v448
        %v450 = vmul.f32 %v445, %v449
        %v451 = vpack.c.bf16 %v450, %v450
        %v452 = vld [vmem:[%s331] sm:$0xf]
        %v453 = vunpack.c.l.bf16 %v452
        %v455 = vsel %vm439, %v451, 0
        %vm457 = vcmask 1043456
        %v458 = vsel %vm457, %v389, 0
        %460 = vmatprep.subr.bf16.mxu0 0
        %461 = vmatpush1.bf16.msra.mxu0 0
        %462 = vmatprep.subr.bf16.mxu0 0
        %463 = vmatpush1.bf16.msra.mxu0 0
        %464 = vmatprep.subr.bf16.mxu0 0
        %465 = vmatpush1.bf16.msra.mxu0 0
        %466 = vmatprep.subr.bf16.mxu0 0
        %467 = vmatpush1.bf16.msra.mxu0 0
        %468 = vmatprep.subr.bf16.mxu0 0
        %469 = vmatpush1.bf16.msra.mxu0 0
        %470 = vmatprep.subr.bf16.mxu0 0
        %471 = vmatpush1.bf16.msra.mxu0 0
        %472 = vmatprep.subr.bf16.mxu0 0
        %473 = vmatpush1.bf16.msra.mxu0 0
        %474 = vmatprep.subr.bf16.mxu0 0
        %475 = vmatpush1.bf16.msra.mxu0 %v458
        %476 = vmatprep.subr.bf16.mxu0 0
        %477 = vmatpush2.bf16.msra.mxu0 0
        %478 = vmatprep.subr.bf16.mxu0 0
        %479 = vmatpush2.bf16.msra.mxu0 0
        %480 = vmatprep.subr.bf16.mxu0 0
        %481 = vmatpush2.bf16.msra.mxu0 0
        %482 = vmatprep.subr.bf16.mxu0 0
        %483 = vmatpush2.bf16.msra.mxu0 0
        %484 = vmatprep.subr.bf16.mxu0 0
        %485 = vmatpush2.bf16.msra.mxu0 0
        %486 = vmatprep.subr.bf16.mxu0 0
        %487 = vmatpush2.bf16.msra.mxu0 0
        %488 = vmatprep.subr.bf16.mxu0 0
        %489 = vmatpush2.bf16.msra.mxu0 0
        %490 = vmatprep.subr.bf16.mxu0 0
        %491 = vmatpush2.bf16.msra.mxu0 0
        %492 = vmatprep.mubr.bf16.mxu0 0
        %493 = vmatmul.mubr.bf16.gmra.mxu0 %v455
        %v494 = vpop.f32.mrf.mxu0
        %v495 = vadd.f32 %v453, %v494
        %v496 = vpop.f32.mrf.mxu0
        %v497 = vpop.f32.mrf.mxu0
        %v498 = vpop.f32.mrf.mxu0
        %499 = vdwg.mxu0
        %v500 = vpack.c.bf16 %v495, %v495
        %v501 = vld [vmem:[#allocation8] sm:$0xf]
        %v502 = vld [vmem:[#allocation8 + $0x4] sm:$0xf]
        %v503 = vld [vmem:[#allocation8 + $0x8] sm:$0xf]
        %v504 = vld [vmem:[#allocation8 + $0xc] sm:$0xf]
        %v509 = vunpack.c.l.b16 %v501
        %v510 = vunpack.c.l.b16 %v502
        %v511 = vunpack.c.l.b16 %v503
        %v512 = vunpack.c.l.b16 %v504
        %v513 = vpack.c.b16 %v510, %v509
        %v514 = vpack.c.b16 %v512, %v511
        %v518 = vsel %vm392, %v500, 0
        %520 = vmatprep.subr.bf16.mxu0 0
        %521 = vmatpush1.bf16.msra.mxu0 0
        %522 = vmatprep.subr.bf16.mxu0 0
        %523 = vmatpush1.bf16.msra.mxu0 0
        %524 = vmatprep.subr.bf16.mxu0 0
        %525 = vmatpush1.bf16.msra.mxu0 0
        %526 = vmatprep.subr.bf16.mxu0 0
        %527 = vmatpush1.bf16.msra.mxu0 0
        %528 = vmatprep.subr.bf16.mxu0 0
        %529 = vmatpush1.bf16.msra.mxu0 0
        %530 = vmatprep.subr.bf16.mxu0 0
        %531 = vmatpush1.bf16.msra.mxu0 0
        %532 = vmatprep.subr.bf16.mxu0 0
        %533 = vmatpush1.bf16.msra.mxu0 %v514
        %534 = vmatprep.subr.bf16.mxu0 0
        %535 = vmatpush1.bf16.msra.mxu0 %v513
        %536 = vmatprep.subr.bf16.mxu0 0
        %537 = vmatpush2.bf16.msra.mxu0 0
        %538 = vmatprep.subr.bf16.mxu0 0
        %539 = vmatpush2.bf16.msra.mxu0 0
        %540 = vmatprep.subr.bf16.mxu0 0
        %541 = vmatpush2.bf16.msra.mxu0 0
        %542 = vmatprep.subr.bf16.mxu0 0
        %543 = vmatpush2.bf16.msra.mxu0 0
        %544 = vmatprep.subr.bf16.mxu0 0
        %545 = vmatpush2.bf16.msra.mxu0 0
        %546 = vmatprep.subr.bf16.mxu0 0
        %547 = vmatpush2.bf16.msra.mxu0 0
        %548 = vmatprep.subr.bf16.mxu0 0
        %549 = vmatpush2.bf16.msra.mxu0 0
        %550 = vmatprep.subr.bf16.mxu0 0
        %551 = vmatpush2.bf16.msra.mxu0 0
        %552 = vmatprep.mubr.bf16.mxu0 0
        %553 = vmatmul.mubr.bf16.gmra.mxu0 %v518
        %v554 = vpop.f32.mrf.mxu0
        %v555 = vadd.f32 0.0, %v554
        %v556 = vpop.f32.mrf.mxu0
        %v557 = vpop.f32.mrf.mxu0
        %v558 = vpop.f32.mrf.mxu0
        %559 = vdwg.mxu0
        %v560 = vmax.f32 %v555, 0.0
        %v561 = vadd.f32 %v453, %v560
        %v562 = vpack.c.bf16 %v561, %v561
        %v563 = vld [vmem:[#allocation10] sm:$0xf]
        %v564 = vld [vmem:[#allocation10 + $0x4] sm:$0xf]
        %v565 = vld [vmem:[#allocation10 + $0x8] sm:$0xf]
        %v566 = vld [vmem:[#allocation10 + $0xc] sm:$0xf]
        %v567 = vld [vmem:[%s5] sm:$0x1]
        %v569 = vlaneseq
        %v570 = vshrl.u32 %v569, 7
        %v571 = vsub.s32 0, %v570
        %v572 = vrot.slane %v567, %v571
        %v578 = vunpack.c.l.b16 %v563
        %v579 = vunpack.c.l.b16 %v564
        %v580 = vunpack.c.l.b16 %v565
        %v581 = vunpack.c.l.b16 %v566
        %v582 = vpack.c.b16 %v579, %v578
        %v583 = vpack.c.b16 %v581, %v580
        %v587 = vsel %vm392, %v562, 0
        %589 = vmatprep.subr.bf16.mxu0 0
        %590 = vmatpush1.bf16.msra.mxu0 0
        %591 = vmatprep.subr.bf16.mxu0 0
        %592 = vmatpush1.bf16.msra.mxu0 0
        %593 = vmatprep.subr.bf16.mxu0 0
        %594 = vmatpush1.bf16.msra.mxu0 0
        %595 = vmatprep.subr.bf16.mxu0 0
        %596 = vmatpush1.bf16.msra.mxu0 0
        %597 = vmatprep.subr.bf16.mxu0 0
        %598 = vmatpush1.bf16.msra.mxu0 0
        %599 = vmatprep.subr.bf16.mxu0 0
        %600 = vmatpush1.bf16.msra.mxu0 0
        %601 = vmatprep.subr.bf16.mxu0 0
        %602 = vmatpush1.bf16.msra.mxu0 %v583
        %603 = vmatprep.subr.bf16.mxu0 0
        %604 = vmatpush1.bf16.msra.mxu0 %v582
        %605 = vmatprep.subr.bf16.mxu0 0
        %606 = vmatpush2.bf16.msra.mxu0 0
        %607 = vmatprep.subr.bf16.mxu0 0
        %608 = vmatpush2.bf16.msra.mxu0 0
        %609 = vmatprep.subr.bf16.mxu0 0
        %610 = vmatpush2.bf16.msra.mxu0 0
        %611 = vmatprep.subr.bf16.mxu0 0
        %612 = vmatpush2.bf16.msra.mxu0 0
        %613 = vmatprep.subr.bf16.mxu0 0
        %614 = vmatpush2.bf16.msra.mxu0 0
        %615 = vmatprep.subr.bf16.mxu0 0
        %616 = vmatpush2.bf16.msra.mxu0 0
        %617 = vmatprep.subr.bf16.mxu0 0
        %618 = vmatpush2.bf16.msra.mxu0 0
        %619 = vmatprep.subr.bf16.mxu0 0
        %620 = vmatpush2.bf16.msra.mxu0 0
        %621 = vmatprep.mubr.bf16.mxu0 0
        %622 = vmatmul.mubr.bf16.gmra.mxu0 %v587
        %v623 = vpop.f32.mrf.mxu0
        %v624 = vadd.f32 %v572, %v623
        %v625 = vpop.f32.mrf.mxu0
        %v626 = vpop.f32.mrf.mxu0
        %v627 = vpop.f32.mrf.mxu0
        %628 = vdwg.mxu0
        %629 = vst [vmem:[%s386] sm:$0xff] %v624
        %s630 = sand.u32 %s194, 1
        %s631 = scalar_lea.sflag [#allocation4], %s630
        %s632 = sand.u32 %s194, 1
        %s633 = smul.addr %s632, 8
        %s634 = scalar_lea.vmem [#allocation11], %s633
        // Predicated region
        $region65: #{tpu_custom_call.1} parent=43 // pred_check
          %p635 = pneg %p204
        $region66: #{tpu_custom_call.1} parent=43 // pred_check_branch
          %637 = sbr.rel (%p635) target = $region68
        $region67: #{tpu_custom_call.1} parent=43 // pred_region
          %s639 = ssub.s32 128, 128
          %640 = vsyncadd %s631, %s639
          %s641 = sadd.s32 %s32, %s31
          %s642 = smul.addr %s641, 128
          %s643 = scalar_lea.hbm %s6, %s642
          %s645 = sshll.u32 %s634, 4
          %s646 = int_to_ptr.vmem [resolvable:$true] %s645
          %648 = dma.vmem_to_hbm [thread:$0]  %s646, 128, %s643, %s631
        $region68: #{tpu_custom_call.1} parent=43 // pred_fallthru
          _
      $region44: #{tpu_custom_call.1} parent=5 // pred_fallthru
        _
      %p649 = scmp.le.s32.totalorder 2, %s22
      // Predicated region
      $region69: #{tpu_custom_call.1} parent=5 // pred_check
        %p650 = pneg %p649
      $region70: #{tpu_custom_call.1} parent=5 // pred_check_branch
        %652 = sbr.rel (%p650) target = $region72
      $region71: #{tpu_custom_call.1} parent=5 // pred_region
        %s653 = ssub.s32 %s22, 2
        // Predicated region
        $region73: #{tpu_custom_call.1} parent=71 // pred_check
          %p654 = pneg %p210
        $region74: #{tpu_custom_call.1} parent=71 // pred_check_branch
          %656 = sbr.rel (%p654) target = $region76
        $region75: #{tpu_custom_call.1} parent=71 // pred_region
          %s657 = sand.u32 %s195, 1
          %s658 = scalar_lea.sflag [#allocation4], %s657
          %s659 = sand.u32 %s195, 1
          %s660 = smul.addr %s659, 8
          %s661 = scalar_lea.vmem [#allocation11], %s660
          %662 = dma.done %s658, 128
        $region76: #{tpu_custom_call.1} parent=71 // pred_fallthru
          _
      $region72: #{tpu_custom_call.1} parent=5 // pred_fallthru
        _
    $region6: #{tpu_custom_call.1} parent=1 // loop_footer
      %s26 = sadd.s32 1, %s22
    $region7: #{tpu_custom_call.1} parent=1 // loop_footer_branch
      %21 = sbr.rel target = $region3
    $region8: #{tpu_custom_call.1} parent=1 // loop_exit
      _
    %663 = vsyncpa [#allocation3], 1
    %s664 = scalar_lea.sflag [#allocation3], 1
    %665 = vsyncpa %s664, 1
    %666 = vsyncpa [#allocation6], 1
    %s667 = scalar_lea.sflag [#allocation6], 1
    %668 = vsyncpa %s667, 1
    %669 = vsyncpa [#allocation9], 1
    %670 = vsyncpa [#allocation4], 1
    %s671 = scalar_lea.sflag [#allocation4], 1
    %672 = vsyncpa %s671, 1

</llo_original>
